<compile_context>
chip_gen: v7x
topology: tpu7x:2x2x1
jax: 0.10.0
libtpu: 0.0.40
codegen_flags: <defaults>
</compile_context>

<pallas_src>
import functools

import jax
import jax.numpy as jnp
from jax.experimental import pallas as pl
from jax.experimental.pallas import tpu as pltpu


# --------------------------------------------------------------------------- #
# Per-generation tiling (re-derived from physical VMEM).
def _tpu_config():
    """Returns (tile_dst, tile_src, vmem_limit_bytes)."""
    try:
        info = pltpu.get_tpu_info()
        vmem = int(getattr(info, "vmem_capacity_bytes", 0) or 0)
    except Exception:  # interpret mode / CPU emulation / unknown chip
        vmem = 0
    if vmem >= 100 * 1024 * 1024:
        # v5e / v6e: 128 MiB VMEM per TensorCore -> wider source tiles amortize
        # the ~0.35 us/step overhead and halve adj/hpT DMA descriptor count.
        return 128, 256, 96 * 1024 * 1024
    # v7x (64 MiB per TC) or unknown: conservative tiles / limit.
    return 128, 128, 48 * 1024 * 1024


# --------------------------------------------------------------------------- #
# Shared linear projection + per-layer attention precompute (one pass over x):
#   hw = x @ W + b         (lin_l == lin_r, share_weights=True)
#   hv = hw (bf16)         values for the alpha @ V MXU matmul
#   hp = 0.4*|att| ⊙ hw    scaled features for the |.| part of the logit
#   a  = 0.6 * hw @ att    per-head rank-1 part of the logit
def linear_prep_kernel(x_ref, w_ref, b_ref, attA_ref, scale_ref,
                       hv_ref, hp_ref, a_ref):
    hw = jnp.dot(x_ref[...], w_ref[...], preferred_element_type=jnp.float32) \
        + b_ref[...]
    hv_ref[...] = hw.astype(hv_ref.dtype)
    hp_ref[...] = (hw * scale_ref[...]).astype(hp_ref.dtype)
    a_ref[...] = jnp.dot(hw, attA_ref[...], preferred_element_type=jnp.float32)


def linear_prep(x, w, b, attA, scale, *, tile_rows=128):
    n, c_in = x.shape
    c_out = w.shape[1]
    n_heads = attA.shape[1]
    tile_rows = min(tile_rows, n)
    assert n % tile_rows == 0
    return pl.pallas_call(
        linear_prep_kernel,
        out_shape=(
            jax.ShapeDtypeStruct((n, c_out), jnp.bfloat16),    # hv (values)
            jax.ShapeDtypeStruct((n, c_out), jnp.float32),     # hp
            jax.ShapeDtypeStruct((n, n_heads), jnp.float32),   # a
        ),
        grid=(n // tile_rows,),
        in_specs=[
            pl.BlockSpec((tile_rows, c_in), lambda i: (i, 0)),
            pl.BlockSpec((c_in, c_out), lambda i: (0, 0)),
            pl.BlockSpec((1, c_out), lambda i: (0, 0)),
            pl.BlockSpec((c_out, n_heads), lambda i: (0, 0)),
            pl.BlockSpec((1, c_out), lambda i: (0, 0)),
        ],
        out_specs=(
            pl.BlockSpec((tile_rows, c_out), lambda i: (i, 0)),
            pl.BlockSpec((tile_rows, c_out), lambda i: (i, 0)),
            pl.BlockSpec((tile_rows, n_heads), lambda i: (i, 0)),
        ),
        compiler_params=pltpu.CompilerParams(dimension_semantics=("parallel",)),
    )(x, w, b, attA, scale)


# --------------------------------------------------------------------------- #
# Flash-style GATv2 attention + sum aggregation, all heads fused.
# grid = (dst tiles [parallel], heads [parallel], src tiles [arbitrary]).
def gatv2_flash_kernel(hp_ref, hpT_ref, hv_ref, ac_ref, ar_ref, sgn_ref,
                       bias_ref, adj_ref, out_ref, m_sc, l_sc, acc_sc,
                       *, apply_gelu):
    j = pl.program_id(2)

    @pl.when(j == 0)
    def _init():
        m_sc[...] = jnp.full(m_sc.shape, -1e30, dtype=m_sc.dtype)
        l_sc[...] = jnp.zeros(l_sc.shape, dtype=l_sc.dtype)
        acc_sc[...] = jnp.zeros(acc_sc.shape, dtype=acc_sc.dtype)

    d_head = hp_ref.shape[1]
    a_dst = ac_ref[0]                       # (TI, 1)  0.6 * att.hw  (dst rows)
    a_src = ar_ref[0]                       # (1, TJ)  0.6 * att.hw  (src cols)
    sgn = sgn_ref[...]                      # (dh, 1)  sign(att_d)

    # GATv2 logits, decomposed:
    #   s[i,j] = 0.6*(a_i + a_j) + sum_d sign(att_d) * |hp_i,d + hp_j,d|
    # The D-sum is an unrolled accumulation of rank-1 broadcast terms: every
    # intermediate is a (TI, TJ) tile of vregs (no (TI,TJ,D) VMEM tensor, no XLU
    # lane reductions); VPU-only, MXU/EUP/XLU stay free for softmax and P @ V.
    # On v6e/v7x this block can additionally run in bf16 for ~2x (keep f32 here
    # as a single source also valid on v5e, which has no bf16 VALU).
    s = a_dst + a_src                       # (TI, TJ)
    for d in range(d_head):
        col = hp_ref[:, d:d + 1]            # (TI, 1)  dst features, one channel
        row = hpT_ref[d:d + 1, :]           # (1, TJ)  src features, one channel
        s = s + sgn[d:d + 1, :] * jnp.abs(col + row)

    mask = adj_ref[...] > 0                 # (TI, TJ), adj[i, j] = 1 iff edge j->i
    s = jnp.where(mask, s, -1e30)           # finite fill: avoids (-inf)-(-inf) NaN

    # Online (flash-style) masked softmax across source tiles.
    m_prev = m_sc[...]
    m_new = jnp.maximum(m_prev, jnp.max(s, axis=-1, keepdims=True))
    p = jnp.where(mask, jnp.exp(s - m_new), 0.0)   # zeroing is load-bearing for
    pb = p.astype(jnp.bfloat16)                    # fully-masked rows
    scale = jnp.exp(m_prev - m_new)
    # Denominator accumulated from the SAME bf16 p as the numerator.
    l_sc[...] = scale * l_sc[...] + jnp.sum(pb.astype(jnp.float32), axis=-1,
                                            keepdims=True)
    acc_sc[...] = scale * acc_sc[...] + jnp.dot(    # MXU, bf16 in / f32 acc
        pb, hv_ref[...], preferred_element_type=jnp.float32)
    m_sc[...] = m_new

    @pl.when(j == pl.num_programs(2) - 1)
    def _finalize():
        inv_l = pl.reciprocal(jnp.maximum(l_sc[...], 1e-30), approx=True)
        out = acc_sc[...] * inv_l + bias_ref[0]
        if apply_gelu:
            # TODO(synk): torch.nn.GELU defaults to the exact erf form; the tanh
            # approximation used in-kernel differs by < 4e-4.
            out = 0.5 * out * (1.0 + jnp.tanh(
                0.7978845608028654 * (out + 0.044715 * out * out * out)))
        out_ref[...] = out.astype(out_ref.dtype)


def gatv2_attention(hp, hpT, hv, ac, ar, sgn, bias, adj, *, apply_gelu,
                    tile_dst, tile_src, vmem_limit):
    n, d = hv.shape
    n_heads = ac.shape[0]
    d_head = d // n_heads
    # TODO(synk): lane-sparse per-head outputs (d_head not a multiple of 128 with
    # several heads) would need a fused-feature out layout; not needed here.
    assert d_head % 128 == 0 or n_heads == 1
    assert d_head % 8 == 0
    tile_dst = min(tile_dst, n)
    tile_src = min(tile_src, n)
    assert n % tile_dst == 0 and n % tile_src == 0

    kernel = functools.partial(gatv2_flash_kernel, apply_gelu=apply_gelu)
    grid = (n // tile_dst, n_heads, n // tile_src)
    return pl.pallas_call(
        kernel,
        out_shape=jax.ShapeDtypeStruct((n, d), jnp.float32),
        grid=grid,
        in_specs=[
            pl.BlockSpec((tile_dst, d_head), lambda i, h, j: (i, h)),    # hp  (dst)
            pl.BlockSpec((d_head, tile_src), lambda i, h, j: (h, j)),    # hp^T(src)
            pl.BlockSpec((tile_src, d_head), lambda i, h, j: (j, h)),    # hv values
            pl.BlockSpec((1, tile_dst, 1), lambda i, h, j: (h, i, 0)),   # a   (dst)
            pl.BlockSpec((1, 1, tile_src), lambda i, h, j: (h, 0, j)),   # a   (src)
            pl.BlockSpec((d_head, 1), lambda i, h, j: (h, 0)),           # sign(att)
            pl.BlockSpec((1, 1, d_head), lambda i, h, j: (h, 0, 0)),     # conv bias
            pl.BlockSpec((tile_dst, tile_src), lambda i, h, j: (i, j)),  # adj int8
        ],
        out_specs=pl.BlockSpec((tile_dst, d_head), lambda i, h, j: (i, h)),
        scratch_shapes=[
            pltpu.VMEM((tile_dst, 1), jnp.float32),        # running max m
            pltpu.VMEM((tile_dst, 1), jnp.float32),        # running denom l
            pltpu.VMEM((tile_dst, d_head), jnp.float32),   # running numerator
        ],
        compiler_params=pltpu.CompilerParams(
            dimension_semantics=("parallel", "parallel", "arbitrary"),
            vmem_limit_bytes=vmem_limit,
        ),
    )(hp, hpT, hv, ac, ar, sgn, bias, adj)


# --------------------------------------------------------------------------- #
# Output head: GraphEncoderOutput (residual=True) or Sequential(Linear, LN) (False).
def output_head_kernel(x_ref, w_ref, b_ref, gamma_ref, beta_ref, out_ref,
                       *, residual):
    x = x_ref[...]
    y = jnp.dot(x, w_ref[...], preferred_element_type=jnp.float32) + b_ref[...]
    if residual:
        y = y + x                        # GraphEncoderOutput: LN(dense(x) + x)
    mu = jnp.mean(y, axis=-1, keepdims=True)
    xc = y - mu
    var = jnp.mean(xc * xc, axis=-1, keepdims=True)
    out_ref[...] = (xc * jax.lax.rsqrt(var + 1e-12)) * gamma_ref[...] \
        + beta_ref[...]


def output_head(x, w, b, gamma, beta, *, residual, tile_rows=128):
    n, c = x.shape
    tile_rows = min(tile_rows, n)
    assert n % tile_rows == 0
    kernel = functools.partial(output_head_kernel, residual=residual)
    return pl.pallas_call(
        kernel,
        out_shape=jax.ShapeDtypeStruct((n, c), jnp.float32),
        grid=(n // tile_rows,),
        in_specs=[
            pl.BlockSpec((tile_rows, c), lambda i: (i, 0)),
            pl.BlockSpec((c, c), lambda i: (0, 0)),
            pl.BlockSpec((1, c), lambda i: (0, 0)),
            pl.BlockSpec((1, c), lambda i: (0, 0)),
            pl.BlockSpec((1, c), lambda i: (0, 0)),
        ],
        out_specs=pl.BlockSpec((tile_rows, c), lambda i: (i, 0)),
        compiler_params=pltpu.CompilerParams(dimension_semantics=("parallel",)),
    )(x, w, b, gamma, beta)


# --------------------------------------------------------------------------- #
# Full GATv2Encoder.forward (eval mode; dropout layers are identity).
def _layer_attention_params(att):
    """Tiny O(D)-sized derived constants for the decomposed logit."""
    n_heads, d_head = att.shape
    att_flat = att.reshape(1, n_heads * d_head)
    scale = 0.4 * jnp.abs(att_flat)                          # (1, D)
    sgn = jnp.sign(att_flat).reshape(n_heads * d_head, 1)    # (D, 1)
    eye_h = jnp.eye(n_heads, dtype=att.dtype)
    attA = 0.6 * (att[:, :, None] * eye_h[:, None, :]).reshape(
        n_heads * d_head, n_heads)                           # (D, H) block-diagonal
    return scale, sgn, attA


def gatv2_encoder_forward(x, adj, params, num_trg_nodes, *,
                          remove_output_dropout=True):
    tile_dst, tile_src, vmem_limit = _tpu_config()
    h = x
    n_layers = len(params["convs"])
    for li, conv in enumerate(params["convs"]):
        n_heads, d_head = conv["att"].shape
        scale, sgn, attA = _layer_attention_params(conv["att"])
        hv, hp, a = linear_prep(h, conv["w_lin"], conv["b_lin"], attA, scale)
        # O(N*D) layout plumbing (keeps in-kernel access lane/sublane aligned so
        # the kernel needs no per-step transposes); all O(N^2) work is in-kernel.
        hpT = hp.T                               # (D, N)
        at = a.T                                 # (H, N)
        ac = at[:, :, None]                      # (H, N, 1) dst-side rank-1 term
        ar = at[:, None, :]                      # (H, 1, N) src-side rank-1 term
        bias = conv["bias"].reshape(n_heads, 1, d_head)
        h = gatv2_attention(hp, hpT, hv, ac, ar, sgn, bias, adj,
                            apply_gelu=(li != n_layers - 1),
                            tile_dst=tile_dst, tile_src=tile_src,
                            vmem_limit=vmem_limit)
        # F.dropout between layers: identity in eval mode.
    z = h[:num_trg_nodes]
    return output_head(z, params["out_w"], params["out_b"],
                       params["out_gamma"], params["out_beta"],
                       residual=remove_output_dropout)


# --------------------------------------------------------------------------- #
# Pure-JAX f32 reference of the same eval-mode forward (exact erf GELU, exact
# division, un-decomposed leaky-relu logits).
def reference_forward(x, adj, params, num_trg_nodes, *, remove_output_dropout=True):
    adj_f = adj.astype(jnp.float32)
    h = x
    n_layers = len(params["convs"])
    for li, conv in enumerate(params["convs"]):
        hw = h @ conv["w_lin"] + conv["b_lin"]
        n_heads, d_head = conv["att"].shape
        outs = []
        for hh in range(n_heads):
            hd = hw[:, hh * d_head:(hh + 1) * d_head]          # (N, D)
            att = conv["att"][hh]                              # (D,)
            z = hd[:, None, :] + hd[None, :, :]                # (N_dst, N_src, D)
            z = jnp.where(z >= 0, z, 0.2 * z)
            s = jnp.einsum("ijd,d->ij", z, att)
            s = jnp.where(adj_f > 0, s, -1e30)
            m = jnp.max(s, axis=-1, keepdims=True)
            p = jnp.exp(s - m) * adj_f
            alpha = p / jnp.maximum(p.sum(axis=-1, keepdims=True), 1e-30)
            outs.append(alpha @ hd)
        o = outs[0] if n_heads == 1 else jnp.concatenate(outs, axis=1)
        h = o + conv["bias"]
        if li != n_layers - 1:
            h = jax.nn.gelu(h, approximate=False)              # torch.nn.GELU (exact)
    z = h[:num_trg_nodes]
    y = z @ params["out_w"] + params["out_b"]
    if remove_output_dropout:
        y = y + z
    mu = y.mean(axis=-1, keepdims=True)
    var = ((y - mu) ** 2).mean(axis=-1, keepdims=True)
    return (y - mu) / jnp.sqrt(var + 1e-12) * params["out_gamma"] + params["out_beta"]


# --------------------------------------------------------------------------- #
if __name__ == "__main__":
    key = jax.random.PRNGKey(0)
    keys = jax.random.split(key, 3)

    # Small but lane-dense shapes (feature dim = 128, node tiles = 128).
    num_nodes = 256
    in_channels = 128
    num_hidden_channels = 128
    num_layers = 2
    num_att_heads = 1
    num_trg_nodes = 128
    # dropout_p / attention_dropout_p: identity in this deterministic eval forward.

    x = jax.random.normal(keys[0], (num_nodes, in_channels), dtype=jnp.float32)

    # Random directed edge set + explicit self loops (add_self_loops=False),
    # densified (edge_index glue) into adj[dst, src] in {0,1}; int8 mask dtype.
    edge_prob = jax.random.uniform(keys[1], (num_nodes, num_nodes))
    adj = jnp.maximum((edge_prob < 0.05).astype(jnp.float32),
                      jnp.eye(num_nodes, dtype=jnp.float32)).astype(jnp.int8)

    # Deterministic glorot-style parameters (non-zero biases to exercise the math).
    params = {"convs": []}
    pk = iter(jax.random.split(keys[2], 4 * num_layers + 4))
    for li in range(num_layers):
        c_in = in_channels if li == 0 else num_hidden_channels
        c_out = in_channels if li == num_layers - 1 else num_hidden_channels
        d_head = c_out // num_att_heads
        lim_w = (6.0 / (c_in + c_out)) ** 0.5
        lim_a = (6.0 / (1 + d_head)) ** 0.5
        params["convs"].append({
            "w_lin": jax.random.uniform(next(pk), (c_in, c_out), minval=-lim_w,
                                        maxval=lim_w, dtype=jnp.float32),
            "b_lin": 0.1 * jax.random.normal(next(pk), (1, c_out), dtype=jnp.float32),
            "att": jax.random.uniform(next(pk), (num_att_heads, d_head),
                                      minval=-lim_a, maxval=lim_a, dtype=jnp.float32),
            "bias": 0.1 * jax.random.normal(next(pk), (1, c_out), dtype=jnp.float32),
        })
    lim_o = (6.0 / (2 * in_channels)) ** 0.5
    params["out_w"] = jax.random.uniform(next(pk), (in_channels, in_channels),
                                         minval=-lim_o, maxval=lim_o, dtype=jnp.float32)
    params["out_b"] = 0.1 * jax.random.normal(next(pk), (1, in_channels), dtype=jnp.float32)
    params["out_gamma"] = 1.0 + 0.1 * jax.random.normal(next(pk), (1, in_channels),
                                                        dtype=jnp.float32)
    params["out_beta"] = 0.1 * jax.random.normal(next(pk), (1, in_channels),
                                                 dtype=jnp.float32)

    out = gatv2_encoder_forward(x, adj, params, num_trg_nodes)
    out = jax.block_until_ready(out)

    ref = reference_forward(x, adj, params, num_trg_nodes)

    assert out.shape == (num_trg_nodes, in_channels)
    assert bool(jnp.all(jnp.isfinite(out)))
    # Error budget vs strict-f32 reference: bf16 P / value path through the MXU
    # (~0.2-0.4% rel per layer), tanh-vs-erf GELU (<4e-4), approx reciprocal
    # (~2e-4 rel), online-softmax / decomposition reordering (~1e-6) -> expected
    # worst case ~1e-2 after the final LayerNorm; 4e-2 leaves margin.
    assert jnp.allclose(out, ref, atol=4e-2, rtol=4e-2), "mismatch vs reference"

    print("KERNEL_OK")
</pallas_src>

<mosaic_0001>
module attributes {stable_mosaic.version = 11 : i64} {
  func.func @linear_prep_kernel(%arg0: i32, %arg1: memref<128x128xf32, #tpu.memory_space<vmem>>, %arg2: memref<128x128xf32, #tpu.memory_space<vmem>>, %arg3: memref<1x128xf32, #tpu.memory_space<vmem>>, %arg4: memref<128x1xf32, #tpu.memory_space<vmem>>, %arg5: memref<1x128xf32, #tpu.memory_space<vmem>>, %arg6: memref<128x128xbf16, #tpu.memory_space<vmem>>, %arg7: memref<128x128xf32, #tpu.memory_space<vmem>>, %arg8: memref<128x1xf32, #tpu.memory_space<vmem>>) attributes {dimension_semantics = [#tpu.dimension_semantics<parallel>], iteration_bounds = array<i64: 2>, scalar_prefetch = 0 : i64, scratch_operands = 0 : i64, tpu.core_type = #tpu.core_type<tc>, window_params = [{transform_indices = @transform_0, window_bounds = array<i64: 128, 128>}, {pipeline_mode = #tpu.pipeline_mode<synchronous>, transform_indices = @transform_1, window_bounds = array<i64: 128, 128>}, {pipeline_mode = #tpu.pipeline_mode<synchronous>, transform_indices = @transform_2, window_bounds = array<i64: 1, 128>}, {pipeline_mode = #tpu.pipeline_mode<synchronous>, transform_indices = @transform_3, window_bounds = array<i64: 128, 1>}, {pipeline_mode = #tpu.pipeline_mode<synchronous>, transform_indices = @transform_4, window_bounds = array<i64: 1, 128>}, {transform_indices = @transform_5, window_bounds = array<i64: 128, 128>}, {transform_indices = @transform_6, window_bounds = array<i64: 128, 128>}, {transform_indices = @transform_7, window_bounds = array<i64: 128, 1>}]} {
    %c0 = arith.constant 0 : index
    %c0_0 = arith.constant 0 : index
    %0 = vector.load %arg1[%c0, %c0_0] : memref<128x128xf32, #tpu.memory_space<vmem>>, vector<128x128xf32>
    %c0_1 = arith.constant 0 : index
    %c0_2 = arith.constant 0 : index
    %1 = vector.load %arg2[%c0_1, %c0_2] : memref<128x128xf32, #tpu.memory_space<vmem>>, vector<128x128xf32>
    %cst = arith.constant dense<0.000000e+00> : vector<128x128xf32>
    %2 = tpu.matmul %0, %1, %cst {dimension_numbers = #tpu.dot_dimension_numbers<[1], [0], [0], [1], [0, 0, 1, 1], [], []>} : vector<128x128xf32>, vector<128x128xf32>, vector<128x128xf32> -> vector<128x128xf32>
    %c0_3 = arith.constant 0 : index
    %c0_4 = arith.constant 0 : index
    %3 = vector.load %arg3[%c0_3, %c0_4] : memref<1x128xf32, #tpu.memory_space<vmem>>, vector<1x128xf32>
    %4 = vector.broadcast %3 : vector<1x128xf32> to vector<128x128xf32>
    %5 = arith.addf %2, %4 : vector<128x128xf32>
    %6 = arith.truncf %5 : vector<128x128xf32> to vector<128x128xbf16>
    %c0_5 = arith.constant 0 : index
    %c0_6 = arith.constant 0 : index
    %7 = vector.load %arg6[%c0_5, %c0_6] : memref<128x128xbf16, #tpu.memory_space<vmem>>, vector<128x128xbf16>
    tpu.vector_store %arg6[%c0_5, %c0_6], %6 {strides = array<i32>} : memref<128x128xbf16, #tpu.memory_space<vmem>>, vector<128x128xbf16>,
    %c0_7 = arith.constant 0 : index
    %c0_8 = arith.constant 0 : index
    %8 = vector.load %arg5[%c0_7, %c0_8] : memref<1x128xf32, #tpu.memory_space<vmem>>, vector<1x128xf32>
    %9 = vector.broadcast %8 : vector<1x128xf32> to vector<128x128xf32>
    %10 = arith.mulf %5, %9 : vector<128x128xf32>
    %c0_9 = arith.constant 0 : index
    %c0_10 = arith.constant 0 : index
    %11 = vector.load %arg7[%c0_9, %c0_10] : memref<128x128xf32, #tpu.memory_space<vmem>>, vector<128x128xf32>
    tpu.vector_store %arg7[%c0_9, %c0_10], %10 {strides = array<i32>} : memref<128x128xf32, #tpu.memory_space<vmem>>, vector<128x128xf32>,
    %c0_11 = arith.constant 0 : index
    %c0_12 = arith.constant 0 : index
    %12 = vector.load %arg4[%c0_11, %c0_12] : memref<128x1xf32, #tpu.memory_space<vmem>>, vector<128x1xf32>
    %cst_13 = arith.constant dense<0.000000e+00> : vector<128x1xf32>
    %13 = tpu.matmul %5, %12, %cst_13 {dimension_numbers = #tpu.dot_dimension_numbers<[1], [0], [0], [1], [0, 0, 1, 1], [], []>} : vector<128x128xf32>, vector<128x1xf32>, vector<128x1xf32> -> vector<128x1xf32>
    %c0_14 = arith.constant 0 : index
    %c0_15 = arith.constant 0 : index
    %14 = vector.load %arg8[%c0_14, %c0_15] : memref<128x1xf32, #tpu.memory_space<vmem>>, vector<128x1xf32>
    tpu.vector_store %arg8[%c0_14, %c0_15], %13 {strides = array<i32>} : memref<128x1xf32, #tpu.memory_space<vmem>>, vector<128x1xf32>,
    return
  }
  func.func @transform_0(%arg0: i32) -> (i32, i32) {
    %c0_i32 = arith.constant 0 : i32
    %c0_i32_0 = arith.constant 0 : i32
    return %arg0, %c0_i32 : i32, i32
  }
  func.func @transform_1(%arg0: i32) -> (i32, i32) {
    %c0_i32 = arith.constant 0 : i32
    %c0_i32_0 = arith.constant 0 : i32
    %c0_i32_1 = arith.constant 0 : i32
    return %c0_i32, %c0_i32_0 : i32, i32
  }
  func.func @transform_2(%arg0: i32) -> (i32, i32) {
    %c0_i32 = arith.constant 0 : i32
    %c0_i32_0 = arith.constant 0 : i32
    %c0_i32_1 = arith.constant 0 : i32
    return %c0_i32, %c0_i32_0 : i32, i32
  }
  func.func @transform_3(%arg0: i32) -> (i32, i32) {
    %c0_i32 = arith.constant 0 : i32
    %c0_i32_0 = arith.constant 0 : i32
    %c0_i32_1 = arith.constant 0 : i32
    return %c0_i32, %c0_i32_0 : i32, i32
  }
  func.func @transform_4(%arg0: i32) -> (i32, i32) {
    %c0_i32 = arith.constant 0 : i32
    %c0_i32_0 = arith.constant 0 : i32
    %c0_i32_1 = arith.constant 0 : i32
    return %c0_i32, %c0_i32_0 : i32, i32
  }
  func.func @transform_5(%arg0: i32) -> (i32, i32) {
    %c0_i32 = arith.constant 0 : i32
    %c0_i32_0 = arith.constant 0 : i32
    return %arg0, %c0_i32 : i32, i32
  }
  func.func @transform_6(%arg0: i32) -> (i32, i32) {
    %c0_i32 = arith.constant 0 : i32
    %c0_i32_0 = arith.constant 0 : i32
    return %arg0, %c0_i32 : i32, i32
  }
  func.func @transform_7(%arg0: i32) -> (i32, i32) {
    %c0_i32 = arith.constant 0 : i32
    %c0_i32_0 = arith.constant 0 : i32
    return %arg0, %c0_i32 : i32, i32
  }
}

</mosaic_0001>

<llo_original>
// kernel: tpu_custom_call.1
$region0: #{tpu_custom_call.1}
  #allocation0 [shape = 'u32[]', space=smem, size = 0x4, offset = 0x4, fixed_abs, tag = 'smem constant byte address 0x4 - core index']
  #allocation1 [shape = 'u32[144,128]{1,0:T(1,128)}', space=vmem, size = 0x12000, scoped, tag = 'internal scratch']
  %s0 = inlined_call_operand.hbm [shape: f32[256,128], index: 0, kind: input, shape index: {}]
  %s1 = inlined_call_operand.vmem [shape: f32[128,128], index: 1, kind: input, shape index: {}]
  %s2 = inlined_call_operand.vmem [shape: f32[1,128], index: 2, kind: input, shape index: {}]
  %s3 = inlined_call_operand.vmem [shape: f32[128,1], index: 3, kind: input, shape index: {}]
  %s4 = inlined_call_operand.vmem [shape: f32[1,128], index: 4, kind: input, shape index: {}]
  %s5 = inlined_call_operand.hbm [shape: bf16[256,128], index: 5, kind: output, shape index: {0}]
  %s6 = inlined_call_operand.hbm [shape: f32[256,128], index: 6, kind: output, shape index: {1}]
  %s7 = inlined_call_operand.vmem [shape: f32[256,1], index: 7, kind: output, shape index: {2}]
  %8 = xla_tuple %s5, %s6, %s7
  %s9 = sld [smem:[#allocation0]]
  $region73: #{tpu_custom_call.1} parent=0
    _
  %s11 = ssub.s32 1, %s9
  %s12 = scalar_select 0, %s11, %s9
  $region1: #{tpu_custom_call.1} parent=0
    #allocation2 [shape = 'u8[131072]{0}', space=vmem, size = 0x20000, scoped, tag = 'input window, operand 0']
    #allocation3 [shape = 's32[2]{0}', space=sflag, size = 0x8, scoped, tag = 'scoped memory for tpu_custom_call.1']
    #allocation4 [shape = 's32[2]{0}', space=sflag, size = 0x8, scoped, tag = 'scoped memory for tpu_custom_call.1']
    #allocation5 [shape = 'u8[65536]{0}', space=vmem, size = 0x10000, scoped, tag = 'output window, operand 0']
    #allocation6 [shape = 'u8[131072]{0}', space=vmem, size = 0x20000, scoped, tag = 'output window, operand 1']
    #allocation7 [shape = 's32[2]{0}', space=sflag, size = 0x8, scoped, tag = 'scoped memory for tpu_custom_call.1']
    %13 = vsyncpa [#allocation3], 0
    %s14 = scalar_lea.sflag [#allocation3], 1
    %15 = vsyncpa %s14, 0
    %16 = vsyncpa [#allocation4], 0
    %s17 = scalar_lea.sflag [#allocation4], 1
    %18 = vsyncpa %s17, 0
    %19 = vsyncpa [#allocation7], 0
    %s20 = scalar_lea.sflag [#allocation7], 1
    %21 = vsyncpa %s20, 0
    loop: start=0, step=1, limit=4
    $region2: #{tpu_custom_call.1} parent=1 // loop_pre_header
      _
    $region3: #{tpu_custom_call.1} parent=1 // loop_header
      %s23 = sphi 0, %s27
      %p24 = scmp.ge.s32.totalorder %s23, 4
      %s33 = sphi 0, %s35
      %s36 = sphi 0, %s33
      %s37 = sphi 0, %s36
      %s53 = sphi 0, %s37
      %s57 = sphi 0, %s57
      %s59 = sphi 0, %s57
      %s60 = sphi 0, %s59
      %s74 = sphi 0, %s60
      %s78 = sphi 0, %s78
      %s80 = sphi 0, %s78
      %s81 = sphi 0, %s80
      %s95 = sphi 0, %s81
      %s99 = sphi 0, %s99
      %s101 = sphi 0, %s99
      %s102 = sphi 0, %s101
      %s116 = sphi 0, %s102
      %s120 = sphi 0, %s120
      %s122 = sphi 0, %s120
      %s123 = sphi 0, %s122
      %s137 = sphi 0, %s123
      %s143 = sphi 0, %s145
      %s146 = sphi 0, %s143
      %s147 = sphi 0, %s146
      %s163 = sphi 0, %s147
      %s169 = sphi 0, %s171
      %s172 = sphi 0, %s169
      %s173 = sphi 0, %s172
      %s189 = sphi 0, %s173
      %s195 = sphi 0, %s197
      %s198 = sphi 0, %s195
      %s199 = sphi 0, %s198
      %s215 = sphi 0, %s199
    $region4: #{tpu_custom_call.1} parent=1 // loop_header_branch
      %26 = sbr.rel (%p24) target = $region8
    $region5: #{tpu_custom_call.1} parent=1 // loop_body
      %s28 = ssub.s32 %s23, 1
      %s29 = ssub.s32 %s23, 2
      %s30 = sadd.s32 %s23, 1
      %s31 = ssub.s32 %s23, %s30
      %p32 = scmp.eq.s32.totalorder %s31, 0
      %s34 = sadd.s32 %s33, 1
      %s35 = scalar_select %p32, %s33, %s34
      %p38 = pneg %p32
      %p39 = scmp.eq.s32.totalorder %s23, 1
      %p40 = por %p38, %p39
      %p41 = scmp.ne.s32.totalorder %s33, %s36
      %p42 = scmp.eq.s32.totalorder %s23, 0
      %p43 = por %p41, %p42
      %p44 = scmp.ne.s32.totalorder %s33, %s36
      %p45 = scmp.eq.s32.totalorder %s28, 1
      %p46 = por %p44, %p45
      %p47 = scmp.ne.s32.totalorder %s36, %s37
      %p48 = scmp.eq.s32.totalorder %s28, 0
      %p49 = por %p47, %p48
      %p50 = scmp.ne.s32.totalorder %s36, %s37
      %p51 = scmp.eq.s32.totalorder %s29, 1
      %p52 = por %p50, %p51
      %p54 = scmp.ne.s32.totalorder %s37, %s53
      %p55 = scmp.eq.s32.totalorder %s29, 0
      %p56 = por %p54, %p55
      %s58 = sadd.s32 %s57, 1
      %p61 = scmp.eq.s32.totalorder %s23, 1
      %p62 = scmp.ne.s32.totalorder %s57, %s59
      %p63 = scmp.eq.s32.totalorder %s23, 0
      %p64 = por %p62, %p63
      %p65 = scmp.ne.s32.totalorder %s57, %s59
      %p66 = scmp.eq.s32.totalorder %s28, 1
      %p67 = por %p65, %p66
      %p68 = scmp.ne.s32.totalorder %s59, %s60
      %p69 = scmp.eq.s32.totalorder %s28, 0
      %p70 = por %p68, %p69
      %p71 = scmp.ne.s32.totalorder %s59, %s60
      %p72 = scmp.eq.s32.totalorder %s29, 1
      %p73 = por %p71, %p72
      %p75 = scmp.ne.s32.totalorder %s60, %s74
      %p76 = scmp.eq.s32.totalorder %s29, 0
      %p77 = por %p75, %p76
      %s79 = sadd.s32 %s78, 1
      %p82 = scmp.eq.s32.totalorder %s23, 1
      %p83 = scmp.ne.s32.totalorder %s78, %s80
      %p84 = scmp.eq.s32.totalorder %s23, 0
      %p85 = por %p83, %p84
      %p86 = scmp.ne.s32.totalorder %s78, %s80
      %p87 = scmp.eq.s32.totalorder %s28, 1
      %p88 = por %p86, %p87
      %p89 = scmp.ne.s32.totalorder %s80, %s81
      %p90 = scmp.eq.s32.totalorder %s28, 0
      %p91 = por %p89, %p90
      %p92 = scmp.ne.s32.totalorder %s80, %s81
      %p93 = scmp.eq.s32.totalorder %s29, 1
      %p94 = por %p92, %p93
      %p96 = scmp.ne.s32.totalorder %s81, %s95
      %p97 = scmp.eq.s32.totalorder %s29, 0
      %p98 = por %p96, %p97
      %s100 = sadd.s32 %s99, 1
      %p103 = scmp.eq.s32.totalorder %s23, 1
      %p104 = scmp.ne.s32.totalorder %s99, %s101
      %p105 = scmp.eq.s32.totalorder %s23, 0
      %p106 = por %p104, %p105
      %p107 = scmp.ne.s32.totalorder %s99, %s101
      %p108 = scmp.eq.s32.totalorder %s28, 1
      %p109 = por %p107, %p108
      %p110 = scmp.ne.s32.totalorder %s101, %s102
      %p111 = scmp.eq.s32.totalorder %s28, 0
      %p112 = por %p110, %p111
      %p113 = scmp.ne.s32.totalorder %s101, %s102
      %p114 = scmp.eq.s32.totalorder %s29, 1
      %p115 = por %p113, %p114
      %p117 = scmp.ne.s32.totalorder %s102, %s116
      %p118 = scmp.eq.s32.totalorder %s29, 0
      %p119 = por %p117, %p118
      %s121 = sadd.s32 %s120, 1
      %p124 = scmp.eq.s32.totalorder %s23, 1
      %p125 = scmp.ne.s32.totalorder %s120, %s122
      %p126 = scmp.eq.s32.totalorder %s23, 0
      %p127 = por %p125, %p126
      %p128 = scmp.ne.s32.totalorder %s120, %s122
      %p129 = scmp.eq.s32.totalorder %s28, 1
      %p130 = por %p128, %p129
      %p131 = scmp.ne.s32.totalorder %s122, %s123
      %p132 = scmp.eq.s32.totalorder %s28, 0
      %p133 = por %p131, %p132
      %p134 = scmp.ne.s32.totalorder %s122, %s123
      %p135 = scmp.eq.s32.totalorder %s29, 1
      %p136 = por %p134, %p135
      %p138 = scmp.ne.s32.totalorder %s123, %s137
      %p139 = scmp.eq.s32.totalorder %s29, 0
      %p140 = por %p138, %p139
      %s141 = ssub.s32 %s23, %s30
      %p142 = scmp.eq.s32.totalorder %s141, 0
      %s144 = sadd.s32 %s143, 1
      %s145 = scalar_select %p142, %s143, %s144
      %p148 = pneg %p142
      %p149 = scmp.eq.s32.totalorder %s23, 1
      %p150 = por %p148, %p149
      %p151 = scmp.ne.s32.totalorder %s143, %s146
      %p152 = scmp.eq.s32.totalorder %s23, 0
      %p153 = por %p151, %p152
      %p154 = scmp.ne.s32.totalorder %s143, %s146
      %p155 = scmp.eq.s32.totalorder %s28, 1
      %p156 = por %p154, %p155
      %p157 = scmp.ne.s32.totalorder %s146, %s147
      %p158 = scmp.eq.s32.totalorder %s28, 0
      %p159 = por %p157, %p158
      %p160 = scmp.ne.s32.totalorder %s146, %s147
      %p161 = scmp.eq.s32.totalorder %s29, 1
      %p162 = por %p160, %p161
      %p164 = scmp.ne.s32.totalorder %s147, %s163
      %p165 = scmp.eq.s32.totalorder %s29, 0
      %p166 = por %p164, %p165
      %s167 = ssub.s32 %s23, %s30
      %p168 = scmp.eq.s32.totalorder %s167, 0
      %s170 = sadd.s32 %s169, 1
      %s171 = scalar_select %p168, %s169, %s170
      %p174 = pneg %p168
      %p175 = scmp.eq.s32.totalorder %s23, 1
      %p176 = por %p174, %p175
      %p177 = scmp.ne.s32.totalorder %s169, %s172
      %p178 = scmp.eq.s32.totalorder %s23, 0
      %p179 = por %p177, %p178
      %p180 = scmp.ne.s32.totalorder %s169, %s172
      %p181 = scmp.eq.s32.totalorder %s28, 1
      %p182 = por %p180, %p181
      %p183 = scmp.ne.s32.totalorder %s172, %s173
      %p184 = scmp.eq.s32.totalorder %s28, 0
      %p185 = por %p183, %p184
      %p186 = scmp.ne.s32.totalorder %s172, %s173
      %p187 = scmp.eq.s32.totalorder %s29, 1
      %p188 = por %p186, %p187
      %p190 = scmp.ne.s32.totalorder %s173, %s189
      %p191 = scmp.eq.s32.totalorder %s29, 0
      %p192 = por %p190, %p191
      %s193 = ssub.s32 %s23, %s30
      %p194 = scmp.eq.s32.totalorder %s193, 0
      %s196 = sadd.s32 %s195, 1
      %s197 = scalar_select %p194, %s195, %s196
      %p200 = pneg %p194
      %p201 = scmp.eq.s32.totalorder %s23, 1
      %p202 = por %p200, %p201
      %p203 = scmp.ne.s32.totalorder %s195, %s198
      %p204 = scmp.eq.s32.totalorder %s23, 0
      %p205 = por %p203, %p204
      %p206 = scmp.ne.s32.totalorder %s195, %s198
      %p207 = scmp.eq.s32.totalorder %s28, 1
      %p208 = por %p206, %p207
      %p209 = scmp.ne.s32.totalorder %s198, %s199
      %p210 = scmp.eq.s32.totalorder %s28, 0
      %p211 = por %p209, %p210
      %p212 = scmp.ne.s32.totalorder %s198, %s199
      %p213 = scmp.eq.s32.totalorder %s29, 1
      %p214 = por %p212, %p213
      %p216 = scmp.ne.s32.totalorder %s199, %s215
      %p217 = scmp.eq.s32.totalorder %s29, 0
      %p218 = por %p216, %p217
      %p219 = scmp.le.s32.totalorder 1, %s23
      %p220 = scmp.lt.s32.totalorder %s23, 3
      %p221 = pnand %p219, %p220
      %p222 = pneg %p221
      // Predicated region
      $region9: #{tpu_custom_call.1} parent=5 // pred_check
        _
      $region10: #{tpu_custom_call.1} parent=5 // pred_check_branch
        %224 = sbr.rel (%p221) target = $region12
      $region11: #{tpu_custom_call.1} parent=5 // pred_region
        %s225 = ssub.s32 %s23, 1
        // Predicated region
        $region13: #{tpu_custom_call.1} parent=11 // pred_check
          %p226 = pneg %p70
        $region14: #{tpu_custom_call.1} parent=11 // pred_check_branch
          %228 = sbr.rel (%p226) target = $region16
        $region15: #{tpu_custom_call.1} parent=11 // pred_region
          _
        $region16: #{tpu_custom_call.1} parent=11 // pred_fallthru
          _
        // Predicated region
        $region17: #{tpu_custom_call.1} parent=11 // pred_check
          %p229 = pneg %p91
        $region18: #{tpu_custom_call.1} parent=11 // pred_check_branch
          %231 = sbr.rel (%p229) target = $region20
        $region19: #{tpu_custom_call.1} parent=11 // pred_region
          _
        $region20: #{tpu_custom_call.1} parent=11 // pred_fallthru
          _
        // Predicated region
        $region21: #{tpu_custom_call.1} parent=11 // pred_check
          %p232 = pneg %p112
        $region22: #{tpu_custom_call.1} parent=11 // pred_check_branch
          %234 = sbr.rel (%p232) target = $region24
        $region23: #{tpu_custom_call.1} parent=11 // pred_region
          _
        $region24: #{tpu_custom_call.1} parent=11 // pred_fallthru
          _
        // Predicated region
        $region25: #{tpu_custom_call.1} parent=11 // pred_check
          %p235 = pneg %p133
        $region26: #{tpu_custom_call.1} parent=11 // pred_check_branch
          %237 = sbr.rel (%p235) target = $region28
        $region27: #{tpu_custom_call.1} parent=11 // pred_region
          _
        $region28: #{tpu_custom_call.1} parent=11 // pred_fallthru
          _
      $region12: #{tpu_custom_call.1} parent=5 // pred_fallthru
        _
      %p238 = scmp.lt.s32.totalorder %s23, 2
      // Predicated region
      $region29: #{tpu_custom_call.1} parent=5 // pred_check
        %p239 = pneg %p238
      $region30: #{tpu_custom_call.1} parent=5 // pred_check_branch
        %241 = sbr.rel (%p239) target = $region32
      $region31: #{tpu_custom_call.1} parent=5 // pred_region
        // Predicated region
        $region33: #{tpu_custom_call.1} parent=31 // pred_check
          %p242 = pneg %p43
        $region34: #{tpu_custom_call.1} parent=31 // pred_check_branch
          %244 = sbr.rel (%p242) target = $region36
        $region35: #{tpu_custom_call.1} parent=31 // pred_region
          %s245 = sand.u32 %s33, 1
          %s246 = scalar_lea.sflag [#allocation3], %s245
          %s247 = sand.u32 %s33, 1
          %s248 = smul.addr %s247, 128
          %s249 = scalar_lea.vmem [#allocation2], %s248
          %s250 = smul.u32 16, %s23
          %s252 = ssub.s32 2048, 2048
          %253 = vsyncadd %s246, %s252
          %s254 = smul.addr %s250, 128
          %s255 = scalar_lea.hbm %s0, %s254
          %s256 = sshll.u32 %s249, 4
          %s257 = int_to_ptr.vmem [resolvable:$true] %s256
          %262 = dma.hbm_to_vmem [thread:$0]  %s255, 2048, %s257, %s246, 128, 128, 8
        $region36: #{tpu_custom_call.1} parent=31 // pred_fallthru
          _
      $region32: #{tpu_custom_call.1} parent=5 // pred_fallthru
        _
      %p263 = scmp.le.s32.totalorder 1, %s23
      %p264 = scmp.lt.s32.totalorder %s23, 3
      %p265 = pnand %p263, %p264
      %p266 = pneg %p265
      // Predicated region
      $region37: #{tpu_custom_call.1} parent=5 // pred_check
        _
      $region38: #{tpu_custom_call.1} parent=5 // pred_check_branch
        %268 = sbr.rel (%p265) target = $region40
      $region39: #{tpu_custom_call.1} parent=5 // pred_region
        %s269 = ssub.s32 %s23, 1
        %s270 = sand.u32 %s36, 1
        %s271 = scalar_lea.sflag [#allocation3], %s270
        %s272 = sand.u32 %s36, 1
        %s273 = smul.addr %s272, 128
        %s274 = scalar_lea.vmem [#allocation2], %s273
        // Predicated region
        $region41: #{tpu_custom_call.1} parent=39 // pred_check
          %p275 = pneg %p49
        $region42: #{tpu_custom_call.1} parent=39 // pred_check_branch
          %277 = sbr.rel (%p275) target = $region44
        $region43: #{tpu_custom_call.1} parent=39 // pred_region
          %278 = dma.done %s271, 2048
        $region44: #{tpu_custom_call.1} parent=39 // pred_fallthru
          _
        %s279 = sand.u32 %s36, 1
        %s280 = scalar_lea.sflag [#allocation3], %s279
        %s281 = sand.u32 %s36, 1
        %s282 = smul.addr %s281, 128
        %s283 = scalar_lea.vmem [#allocation2], %s282
        %p284 = pneg %p49
        %p285 = pneg %p46
        %p286 = pneg %p70
        %p287 = pneg %p67
        %p288 = pneg %p91
        %p289 = pneg %p88
        %p290 = pneg %p112
        %p291 = pneg %p109
        %p292 = pneg %p133
        %p293 = pneg %p130
        %p294 = pneg %p159
        %p295 = pneg %p156
        %s296 = sand.u32 %s146, 1
        %s297 = scalar_lea.sflag [#allocation4], %s296
        %s298 = sand.u32 %s146, 1
        %s299 = smul.addr %s298, 64
        %s300 = scalar_lea.vmem [#allocation5], %s299
        %p301 = pneg %p185
        %p302 = pneg %p182
        %s303 = sand.u32 %s172, 1
        %s304 = scalar_lea.sflag [#allocation7], %s303
        %s305 = sand.u32 %s172, 1
        %s306 = smul.addr %s305, 128
        %s307 = scalar_lea.vmem [#allocation6], %s306
        %p308 = pneg %p211
        %p309 = pneg %p208
        %s310 = smul.u32 16, %s28
        %p311 = scmp.lt.s32.totalorder %s310, 31
        %s312 = scalar_select %p311, %s310, 31
        %s313 = smul.addr %s312, 8
        %s314 = scalar_lea.vmem %s7, %s313
        %s315 = smul.u32 16, %s28
        %s316 = smul.u32 16, %s28
        %s317 = smul.u32 16, %s28
        %s318 = smul.u32 16, %s28
        %p319 = scmp.lt.s32.totalorder %s318, 31
        %s320 = scalar_select %p319, %s318, 31
        %s321 = smul.addr %s320, 8
        %s322 = scalar_lea.vmem %s7, %s321
        %s323 = smul.u32 16, %s28
        %v324 = vld [vmem:[%s274] sm:$0xff]
        %v325 = vld [vmem:[%s274 + $0x8] sm:$0xff]
        %v326 = vld [vmem:[%s274 + $0x10] sm:$0xff]
        %v327 = vld [vmem:[%s274 + $0x18] sm:$0xff]
        %v328 = vld [vmem:[%s274 + $0x20] sm:$0xff]
        %v329 = vld [vmem:[%s274 + $0x28] sm:$0xff]
        %v330 = vld [vmem:[%s274 + $0x30] sm:$0xff]
        %v331 = vld [vmem:[%s274 + $0x38] sm:$0xff]
        %v332 = vld [vmem:[%s274 + $0x40] sm:$0xff]
        %v333 = vld [vmem:[%s274 + $0x48] sm:$0xff]
        %v334 = vld [vmem:[%s274 + $0x50] sm:$0xff]
        %v335 = vld [vmem:[%s274 + $0x58] sm:$0xff]
        %v336 = vld [vmem:[%s274 + $0x60] sm:$0xff]
        %v337 = vld [vmem:[%s274 + $0x68] sm:$0xff]
        %v338 = vld [vmem:[%s274 + $0x70] sm:$0xff]
        %v339 = vld [vmem:[%s274 + $0x78] sm:$0xff]
        %v340 = vld [vmem:[%s1] sm:$0xff]
        %v341 = vld [vmem:[%s1 + $0x8] sm:$0xff]
        %v342 = vld [vmem:[%s1 + $0x10] sm:$0xff]
        %v343 = vld [vmem:[%s1 + $0x18] sm:$0xff]
        %v344 = vld [vmem:[%s1 + $0x20] sm:$0xff]
        %v345 = vld [vmem:[%s1 + $0x28] sm:$0xff]
        %v346 = vld [vmem:[%s1 + $0x30] sm:$0xff]
        %v347 = vld [vmem:[%s1 + $0x38] sm:$0xff]
        %v348 = vld [vmem:[%s1 + $0x40] sm:$0xff]
        %v349 = vld [vmem:[%s1 + $0x48] sm:$0xff]
        %v350 = vld [vmem:[%s1 + $0x50] sm:$0xff]
        %v351 = vld [vmem:[%s1 + $0x58] sm:$0xff]
        %v352 = vld [vmem:[%s1 + $0x60] sm:$0xff]
        %v353 = vld [vmem:[%s1 + $0x68] sm:$0xff]
        %v354 = vld [vmem:[%s1 + $0x70] sm:$0xff]
        %v355 = vld [vmem:[%s1 + $0x78] sm:$0xff]
        %v356 = vld [vmem:[%s2] sm:$0x1]
        %v358 = vlaneseq
        %v359 = vshrl.u32 %v358, 7
        %v360 = vsub.s32 0, %v359
        %v361 = vrot.slane %v356, %v360
        %363 = vmatprep.subr.mxu0 0.0
        %364 = vmatpush1.msra.mxu0 %v340
        %365 = vmatprep.subr.mxu0 0.0
        %366 = vmatpush1.msra.mxu0 %v341
        %367 = vmatprep.subr.mxu0 0.0
        %368 = vmatpush1.msra.mxu0 %v342
        %369 = vmatprep.subr.mxu0 0.0
        %370 = vmatpush1.msra.mxu0 %v343
        %371 = vmatprep.subr.mxu0 0.0
        %372 = vmatpush1.msra.mxu0 %v344
        %373 = vmatprep.subr.mxu0 0.0
        %374 = vmatpush1.msra.mxu0 %v345
        %375 = vmatprep.subr.mxu0 0.0
        %376 = vmatpush1.msra.mxu0 %v346
        %377 = vmatprep.subr.mxu0 0.0
        %378 = vmatpush1.msra.mxu0 %v347
        %379 = vmatprep.subr.mxu0 0.0
        %380 = vmatpush1.msra.mxu0 %v348
        %381 = vmatprep.subr.mxu0 0.0
        %382 = vmatpush1.msra.mxu0 %v349
        %383 = vmatprep.subr.mxu0 0.0
        %384 = vmatpush1.msra.mxu0 %v350
        %385 = vmatprep.subr.mxu0 0.0
        %386 = vmatpush1.msra.mxu0 %v351
        %387 = vmatprep.subr.mxu0 0.0
        %388 = vmatpush1.msra.mxu0 %v352
        %389 = vmatprep.subr.mxu0 0.0
        %390 = vmatpush1.msra.mxu0 %v353
        %391 = vmatprep.subr.mxu0 0.0
        %392 = vmatpush1.msra.mxu0 %v354
        %393 = vmatprep.subr.mxu0 0.0
        %394 = vmatpush1.msra.mxu0 %v355
        %395 = vmatprep.subr.mxu0 0.0
        %396 = vmatpush1.msra.mxu0 0.0
        %397 = vmatprep.subr.mxu0 0.0
        %398 = vmatpush1.msra.mxu0 0.0
        %399 = vmatprep.subr.mxu0 0.0
        %400 = vmatpush1.msra.mxu0 0.0
        %401 = vmatprep.subr.mxu0 0.0
        %402 = vmatpush1.msra.mxu0 0.0
        %403 = vmatprep.subr.mxu0 0.0
        %404 = vmatpush1.msra.mxu0 0.0
        %405 = vmatprep.subr.mxu0 0.0
        %406 = vmatpush1.msra.mxu0 0.0
        %407 = vmatprep.subr.mxu0 0.0
        %408 = vmatpush1.msra.mxu0 0.0
        %409 = vmatprep.subr.mxu0 0.0
        %410 = vmatpush1.msra.mxu0 0.0
        %411 = vmatprep.subr.mxu0 0.0
        %412 = vmatpush1.msra.mxu0 0.0
        %413 = vmatprep.subr.mxu0 0.0
        %414 = vmatpush1.msra.mxu0 0.0
        %415 = vmatprep.subr.mxu0 0.0
        %416 = vmatpush1.msra.mxu0 0.0
        %417 = vmatprep.subr.mxu0 0.0
        %418 = vmatpush1.msra.mxu0 0.0
        %419 = vmatprep.subr.mxu0 0.0
        %420 = vmatpush1.msra.mxu0 0.0
        %421 = vmatprep.subr.mxu0 0.0
        %422 = vmatpush1.msra.mxu0 0.0
        %423 = vmatprep.subr.mxu0 0.0
        %424 = vmatpush1.msra.mxu0 0.0
        %425 = vmatprep.subr.mxu0 0.0
        %426 = vmatpush1.msra.mxu0 0.0
        %427 = vmatprep.mubr.f32.mxu0 0.0
        %428 = vmatmul.mubr.f32.gmra.mrb[0].mxu0 %v324
        %v429 = vpop.f32.mrb[0].mxu0
        %v430 = vadd.f32 %v361, %v429
        %v431 = vpop.f32.mrb[0].mxu0
        %432 = vmatprep.mubr.f32.mxu0 0.0
        %433 = vmatmul.mubr.f32.gmra.mrb[0].mxu0 %v325
        %v434 = vpop.f32.mrb[0].mxu0
        %v435 = vadd.f32 %v361, %v434
        %v436 = vpop.f32.mrb[0].mxu0
        %437 = vmatprep.mubr.f32.mxu0 0.0
        %438 = vmatmul.mubr.f32.gmra.mrb[0].mxu0 %v326
        %v439 = vpop.f32.mrb[0].mxu0
        %v440 = vadd.f32 %v361, %v439
        %v441 = vpop.f32.mrb[0].mxu0
        %442 = vmatprep.mubr.f32.mxu0 0.0
        %443 = vmatmul.mubr.f32.gmra.mrb[0].mxu0 %v327
        %v444 = vpop.f32.mrb[0].mxu0
        %v445 = vadd.f32 %v361, %v444
        %v446 = vpop.f32.mrb[0].mxu0
        %447 = vmatprep.mubr.f32.mxu0 0.0
        %448 = vmatmul.mubr.f32.gmra.mrb[0].mxu0 %v328
        %v449 = vpop.f32.mrb[0].mxu0
        %v450 = vadd.f32 %v361, %v449
        %v451 = vpop.f32.mrb[0].mxu0
        %452 = vmatprep.mubr.f32.mxu0 0.0
        %453 = vmatmul.mubr.f32.gmra.mrb[0].mxu0 %v329
        %v454 = vpop.f32.mrb[0].mxu0
        %v455 = vadd.f32 %v361, %v454
        %v456 = vpop.f32.mrb[0].mxu0
        %457 = vmatprep.mubr.f32.mxu0 0.0
        %458 = vmatmul.mubr.f32.gmra.mrb[0].mxu0 %v330
        %v459 = vpop.f32.mrb[0].mxu0
        %v460 = vadd.f32 %v361, %v459
        %v461 = vpop.f32.mrb[0].mxu0
        %462 = vmatprep.mubr.f32.mxu0 0.0
        %463 = vmatmul.mubr.f32.gmra.mrb[0].mxu0 %v331
        %v464 = vpop.f32.mrb[0].mxu0
        %v465 = vadd.f32 %v361, %v464
        %v466 = vpop.f32.mrb[0].mxu0
        %467 = vmatprep.mubr.f32.mxu0 0.0
        %468 = vmatmul.mubr.f32.gmra.mrb[0].mxu0 %v332
        %v469 = vpop.f32.mrb[0].mxu0
        %v470 = vadd.f32 %v361, %v469
        %v471 = vpop.f32.mrb[0].mxu0
        %472 = vmatprep.mubr.f32.mxu0 0.0
        %473 = vmatmul.mubr.f32.gmra.mrb[0].mxu0 %v333
        %v474 = vpop.f32.mrb[0].mxu0
        %v475 = vadd.f32 %v361, %v474
        %v476 = vpop.f32.mrb[0].mxu0
        %477 = vmatprep.mubr.f32.mxu0 0.0
        %478 = vmatmul.mubr.f32.gmra.mrb[0].mxu0 %v334
        %v479 = vpop.f32.mrb[0].mxu0
        %v480 = vadd.f32 %v361, %v479
        %v481 = vpop.f32.mrb[0].mxu0
        %482 = vmatprep.mubr.f32.mxu0 0.0
        %483 = vmatmul.mubr.f32.gmra.mrb[0].mxu0 %v335
        %v484 = vpop.f32.mrb[0].mxu0
        %v485 = vadd.f32 %v361, %v484
        %v486 = vpop.f32.mrb[0].mxu0
        %487 = vmatprep.mubr.f32.mxu0 0.0
        %488 = vmatmul.mubr.f32.gmra.mrb[0].mxu0 %v336
        %v489 = vpop.f32.mrb[0].mxu0
        %v490 = vadd.f32 %v361, %v489
        %v491 = vpop.f32.mrb[0].mxu0
        %492 = vmatprep.mubr.f32.mxu0 0.0
        %493 = vmatmul.mubr.f32.gmra.mrb[0].mxu0 %v337
        %v494 = vpop.f32.mrb[0].mxu0
        %v495 = vadd.f32 %v361, %v494
        %v496 = vpop.f32.mrb[0].mxu0
        %497 = vmatprep.mubr.f32.mxu0 0.0
        %498 = vmatmul.mubr.f32.gmra.mrb[0].mxu0 %v338
        %v499 = vpop.f32.mrb[0].mxu0
        %v500 = vadd.f32 %v361, %v499
        %v501 = vpop.f32.mrb[0].mxu0
        %502 = vmatprep.mubr.f32.mxu0 0.0
        %503 = vmatmul.mubr.f32.gmra.mrb[0].mxu0 %v339
        %v504 = vpop.f32.mrb[0].mxu0
        %v505 = vadd.f32 %v361, %v504
        %v506 = vpop.f32.mrb[0].mxu0
        %507 = vdwg.mxu0
        %v508 = vpack.c.bf16 %v435, %v430
        %v509 = vpack.c.bf16 %v445, %v440
        %v510 = vpack.c.bf16 %v455, %v450
        %v511 = vpack.c.bf16 %v465, %v460
        %v512 = vpack.c.bf16 %v475, %v470
        %v513 = vpack.c.bf16 %v485, %v480
        %v514 = vpack.c.bf16 %v495, %v490
        %v515 = vpack.c.bf16 %v505, %v500
        %v524 = vunpack.c.l.b16 %v508
        %v525 = vunpack.c.h.b16 %v508
        %v526 = vunpack.c.l.b16 %v509
        %v527 = vunpack.c.h.b16 %v509
        %v528 = vunpack.c.l.b16 %v510
        %v529 = vunpack.c.h.b16 %v510
        %v530 = vunpack.c.l.b16 %v511
        %v531 = vunpack.c.h.b16 %v511
        %v532 = vunpack.c.l.b16 %v512
        %v533 = vunpack.c.h.b16 %v512
        %v534 = vunpack.c.l.b16 %v513
        %v535 = vunpack.c.h.b16 %v513
        %v536 = vunpack.c.l.b16 %v514
        %v537 = vunpack.c.h.b16 %v514
        %v538 = vunpack.c.l.b16 %v515
        %v539 = vunpack.c.h.b16 %v515
        %v540 = vpack.c.b16 %v524, %v524
        %v541 = vpack.c.b16 %v525, %v525
        %v542 = vpack.c.b16 %v526, %v526
        %v543 = vpack.c.b16 %v527, %v527
        %v544 = vpack.c.b16 %v528, %v528
        %v545 = vpack.c.b16 %v529, %v529
        %v546 = vpack.c.b16 %v530, %v530
        %v547 = vpack.c.b16 %v531, %v531
        %v548 = vpack.c.b16 %v532, %v532
        %v549 = vpack.c.b16 %v533, %v533
        %v550 = vpack.c.b16 %v534, %v534
        %v551 = vpack.c.b16 %v535, %v535
        %v552 = vpack.c.b16 %v536, %v536
        %v553 = vpack.c.b16 %v537, %v537
        %v554 = vpack.c.b16 %v538, %v538
        %v555 = vpack.c.b16 %v539, %v539
        %572 = vst [vmem:[%s300] sm:$0xf] %v540
        %573 = vst [vmem:[%s300 + $0x4] sm:$0xf] %v541
        %574 = vst [vmem:[%s300 + $0x8] sm:$0xf] %v542
        %575 = vst [vmem:[%s300 + $0xc] sm:$0xf] %v543
        %576 = vst [vmem:[%s300 + $0x10] sm:$0xf] %v544
        %577 = vst [vmem:[%s300 + $0x14] sm:$0xf] %v545
        %578 = vst [vmem:[%s300 + $0x18] sm:$0xf] %v546
        %579 = vst [vmem:[%s300 + $0x1c] sm:$0xf] %v547
        %580 = vst [vmem:[%s300 + $0x20] sm:$0xf] %v548
        %581 = vst [vmem:[%s300 + $0x24] sm:$0xf] %v549
        %582 = vst [vmem:[%s300 + $0x28] sm:$0xf] %v550
        %583 = vst [vmem:[%s300 + $0x2c] sm:$0xf] %v551
        %584 = vst [vmem:[%s300 + $0x30] sm:$0xf] %v552
        %585 = vst [vmem:[%s300 + $0x34] sm:$0xf] %v553
        %586 = vst [vmem:[%s300 + $0x38] sm:$0xf] %v554
        %587 = vst [vmem:[%s300 + $0x3c] sm:$0xf] %v555
        %v588 = vld [vmem:[%s4] sm:$0x1]
        %v590 = vlaneseq
        %v591 = vshrl.u32 %v590, 7
        %v592 = vsub.s32 0, %v591
        %v593 = vrot.slane %v588, %v592
        %v595 = vmul.f32 %v430, %v593
        %v596 = vmul.f32 %v435, %v593
        %v597 = vmul.f32 %v440, %v593
        %v598 = vmul.f32 %v445, %v593
        %v599 = vmul.f32 %v450, %v593
        %v600 = vmul.f32 %v455, %v593
        %v601 = vmul.f32 %v460, %v593
        %v602 = vmul.f32 %v465, %v593
        %v603 = vmul.f32 %v470, %v593
        %v604 = vmul.f32 %v475, %v593
        %v605 = vmul.f32 %v480, %v593
        %v606 = vmul.f32 %v485, %v593
        %v607 = vmul.f32 %v490, %v593
        %v608 = vmul.f32 %v495, %v593
        %v609 = vmul.f32 %v500, %v593
        %v610 = vmul.f32 %v505, %v593
        %611 = vst [vmem:[%s307] sm:$0xff] %v595
        %612 = vst [vmem:[%s307 + $0x8] sm:$0xff] %v596
        %613 = vst [vmem:[%s307 + $0x10] sm:$0xff] %v597
        %614 = vst [vmem:[%s307 + $0x18] sm:$0xff] %v598
        %615 = vst [vmem:[%s307 + $0x20] sm:$0xff] %v599
        %616 = vst [vmem:[%s307 + $0x28] sm:$0xff] %v600
        %617 = vst [vmem:[%s307 + $0x30] sm:$0xff] %v601
        %618 = vst [vmem:[%s307 + $0x38] sm:$0xff] %v602
        %619 = vst [vmem:[%s307 + $0x40] sm:$0xff] %v603
        %620 = vst [vmem:[%s307 + $0x48] sm:$0xff] %v604
        %621 = vst [vmem:[%s307 + $0x50] sm:$0xff] %v605
        %622 = vst [vmem:[%s307 + $0x58] sm:$0xff] %v606
        %623 = vst [vmem:[%s307 + $0x60] sm:$0xff] %v607
        %624 = vst [vmem:[%s307 + $0x68] sm:$0xff] %v608
        %625 = vst [vmem:[%s307 + $0x70] sm:$0xff] %v609
        %626 = vst [vmem:[%s307 + $0x78] sm:$0xff] %v610
        %v627 = vld [vmem:[%s3] sm:$0xff]
        %v628 = vld [vmem:[%s3 + $0x8] sm:$0xff]
        %v629 = vld [vmem:[%s3 + $0x10] sm:$0xff]
        %v630 = vld [vmem:[%s3 + $0x18] sm:$0xff]
        %v631 = vld [vmem:[%s3 + $0x20] sm:$0xff]
        %v632 = vld [vmem:[%s3 + $0x28] sm:$0xff]
        %v633 = vld [vmem:[%s3 + $0x30] sm:$0xff]
        %v634 = vld [vmem:[%s3 + $0x38] sm:$0xff]
        %v635 = vld [vmem:[%s3 + $0x40] sm:$0xff]
        %v636 = vld [vmem:[%s3 + $0x48] sm:$0xff]
        %v637 = vld [vmem:[%s3 + $0x50] sm:$0xff]
        %v638 = vld [vmem:[%s3 + $0x58] sm:$0xff]
        %v639 = vld [vmem:[%s3 + $0x60] sm:$0xff]
        %v640 = vld [vmem:[%s3 + $0x68] sm:$0xff]
        %v641 = vld [vmem:[%s3 + $0x70] sm:$0xff]
        %v642 = vld [vmem:[%s3 + $0x78] sm:$0xff]
        %643 = vmatprep.subr.mxu0 0.0
        %644 = vmatpush1.msra.mxu0 %v627
        %645 = vmatprep.subr.mxu0 0.0
        %646 = vmatpush1.msra.mxu0 %v628
        %647 = vmatprep.subr.mxu0 0.0
        %648 = vmatpush1.msra.mxu0 %v629
        %649 = vmatprep.subr.mxu0 0.0
        %650 = vmatpush1.msra.mxu0 %v630
        %651 = vmatprep.subr.mxu0 0.0
        %652 = vmatpush1.msra.mxu0 %v631
        %653 = vmatprep.subr.mxu0 0.0
        %654 = vmatpush1.msra.mxu0 %v632
        %655 = vmatprep.subr.mxu0 0.0
        %656 = vmatpush1.msra.mxu0 %v633
        %657 = vmatprep.subr.mxu0 0.0
        %658 = vmatpush1.msra.mxu0 %v634
        %659 = vmatprep.subr.mxu0 0.0
        %660 = vmatpush1.msra.mxu0 %v635
        %661 = vmatprep.subr.mxu0 0.0
        %662 = vmatpush1.msra.mxu0 %v636
        %663 = vmatprep.subr.mxu0 0.0
        %664 = vmatpush1.msra.mxu0 %v637
        %665 = vmatprep.subr.mxu0 0.0
        %666 = vmatpush1.msra.mxu0 %v638
        %667 = vmatprep.subr.mxu0 0.0
        %668 = vmatpush1.msra.mxu0 %v639
        %669 = vmatprep.subr.mxu0 0.0
        %670 = vmatpush1.msra.mxu0 %v640
        %671 = vmatprep.subr.mxu0 0.0
        %672 = vmatpush1.msra.mxu0 %v641
        %673 = vmatprep.subr.mxu0 0.0
        %674 = vmatpush1.msra.mxu0 %v642
        %675 = vmatprep.subr.mxu0 0.0
        %676 = vmatpush1.msra.mxu0 0.0
        %677 = vmatprep.subr.mxu0 0.0
        %678 = vmatpush1.msra.mxu0 0.0
        %679 = vmatprep.subr.mxu0 0.0
        %680 = vmatpush1.msra.mxu0 0.0
        %681 = vmatprep.subr.mxu0 0.0
        %682 = vmatpush1.msra.mxu0 0.0
        %683 = vmatprep.subr.mxu0 0.0
        %684 = vmatpush1.msra.mxu0 0.0
        %685 = vmatprep.subr.mxu0 0.0
        %686 = vmatpush1.msra.mxu0 0.0
        %687 = vmatprep.subr.mxu0 0.0
        %688 = vmatpush1.msra.mxu0 0.0
        %689 = vmatprep.subr.mxu0 0.0
        %690 = vmatpush1.msra.mxu0 0.0
        %691 = vmatprep.subr.mxu0 0.0
        %692 = vmatpush1.msra.mxu0 0.0
        %693 = vmatprep.subr.mxu0 0.0
        %694 = vmatpush1.msra.mxu0 0.0
        %695 = vmatprep.subr.mxu0 0.0
        %696 = vmatpush1.msra.mxu0 0.0
        %697 = vmatprep.subr.mxu0 0.0
        %698 = vmatpush1.msra.mxu0 0.0
        %699 = vmatprep.subr.mxu0 0.0
        %700 = vmatpush1.msra.mxu0 0.0
        %701 = vmatprep.subr.mxu0 0.0
        %702 = vmatpush1.msra.mxu0 0.0
        %703 = vmatprep.subr.mxu0 0.0
        %704 = vmatpush1.msra.mxu0 0.0
        %705 = vmatprep.subr.mxu0 0.0
        %706 = vmatpush1.msra.mxu0 0.0
        %707 = vmatprep.mubr.f32.mxu0 0.0
        %708 = vmatmul.mubr.f32.gmra.mrb[0].mxu0 %v430
        %v709 = vpop.f32.mrb[0].mxu0
        %v710 = vadd.f32 0.0, %v709
        %v711 = vpop.f32.mrb[0].mxu0
        %712 = vmatprep.mubr.f32.mxu0 0.0
        %713 = vmatmul.mubr.f32.gmra.mrb[0].mxu0 %v435
        %v714 = vpop.f32.mrb[0].mxu0
        %v715 = vadd.f32 0.0, %v714
        %v716 = vpop.f32.mrb[0].mxu0
        %717 = vmatprep.mubr.f32.mxu0 0.0
        %718 = vmatmul.mubr.f32.gmra.mrb[0].mxu0 %v440
        %v719 = vpop.f32.mrb[0].mxu0
        %v720 = vadd.f32 0.0, %v719
        %v721 = vpop.f32.mrb[0].mxu0
        %722 = vmatprep.mubr.f32.mxu0 0.0
        %723 = vmatmul.mubr.f32.gmra.mrb[0].mxu0 %v445
        %v724 = vpop.f32.mrb[0].mxu0
        %v725 = vadd.f32 0.0, %v724
        %v726 = vpop.f32.mrb[0].mxu0
        %727 = vmatprep.mubr.f32.mxu0 0.0
        %728 = vmatmul.mubr.f32.gmra.mrb[0].mxu0 %v450
        %v729 = vpop.f32.mrb[0].mxu0
        %v730 = vadd.f32 0.0, %v729
        %v731 = vpop.f32.mrb[0].mxu0
        %732 = vmatprep.mubr.f32.mxu0 0.0
        %733 = vmatmul.mubr.f32.gmra.mrb[0].mxu0 %v455
        %v734 = vpop.f32.mrb[0].mxu0
        %v735 = vadd.f32 0.0, %v734
        %v736 = vpop.f32.mrb[0].mxu0
        %737 = vmatprep.mubr.f32.mxu0 0.0
        %738 = vmatmul.mubr.f32.gmra.mrb[0].mxu0 %v460
        %v739 = vpop.f32.mrb[0].mxu0
        %v740 = vadd.f32 0.0, %v739
        %v741 = vpop.f32.mrb[0].mxu0
        %742 = vmatprep.mubr.f32.mxu0 0.0
        %743 = vmatmul.mubr.f32.gmra.mrb[0].mxu0 %v465
        %v744 = vpop.f32.mrb[0].mxu0
        %v745 = vadd.f32 0.0, %v744
        %v746 = vpop.f32.mrb[0].mxu0
        %747 = vmatprep.mubr.f32.mxu0 0.0
        %748 = vmatmul.mubr.f32.gmra.mrb[0].mxu0 %v470
        %v749 = vpop.f32.mrb[0].mxu0
        %v750 = vadd.f32 0.0, %v749
        %v751 = vpop.f32.mrb[0].mxu0
        %752 = vmatprep.mubr.f32.mxu0 0.0
        %753 = vmatmul.mubr.f32.gmra.mrb[0].mxu0 %v475
        %v754 = vpop.f32.mrb[0].mxu0
        %v755 = vadd.f32 0.0, %v754
        %v756 = vpop.f32.mrb[0].mxu0
        %757 = vmatprep.mubr.f32.mxu0 0.0
        %758 = vmatmul.mubr.f32.gmra.mrb[0].mxu0 %v480
        %v759 = vpop.f32.mrb[0].mxu0
        %v760 = vadd.f32 0.0, %v759
        %v761 = vpop.f32.mrb[0].mxu0
        %762 = vmatprep.mubr.f32.mxu0 0.0
        %763 = vmatmul.mubr.f32.gmra.mrb[0].mxu0 %v485
        %v764 = vpop.f32.mrb[0].mxu0
        %v765 = vadd.f32 0.0, %v764
        %v766 = vpop.f32.mrb[0].mxu0
        %767 = vmatprep.mubr.f32.mxu0 0.0
        %768 = vmatmul.mubr.f32.gmra.mrb[0].mxu0 %v490
        %v769 = vpop.f32.mrb[0].mxu0
        %v770 = vadd.f32 0.0, %v769
        %v771 = vpop.f32.mrb[0].mxu0
        %772 = vmatprep.mubr.f32.mxu0 0.0
        %773 = vmatmul.mubr.f32.gmra.mrb[0].mxu0 %v495
        %v774 = vpop.f32.mrb[0].mxu0
        %v775 = vadd.f32 0.0, %v774
        %v776 = vpop.f32.mrb[0].mxu0
        %777 = vmatprep.mubr.f32.mxu0 0.0
        %778 = vmatmul.mubr.f32.gmra.mrb[0].mxu0 %v500
        %v779 = vpop.f32.mrb[0].mxu0
        %v780 = vadd.f32 0.0, %v779
        %v781 = vpop.f32.mrb[0].mxu0
        %782 = vmatprep.mubr.f32.mxu0 0.0
        %783 = vmatmul.mubr.f32.gmra.mrb[0].mxu0 %v505
        %v784 = vpop.f32.mrb[0].mxu0
        %v785 = vadd.f32 0.0, %v784
        %v786 = vpop.f32.mrb[0].mxu0
        %787 = vdwg.mxu0
        %vm788 = vcmask 7168
        %789 = vst.msk [vmem:[%s322] sm:$0xff] %vm788, %v710
        %790 = vst.msk [vmem:[%s322 + $0x8] sm:$0xff] %vm788, %v715
        %791 = vst.msk [vmem:[%s322 + $0x10] sm:$0xff] %vm788, %v720
        %792 = vst.msk [vmem:[%s322 + $0x18] sm:$0xff] %vm788, %v725
        %793 = vst.msk [vmem:[%s322 + $0x20] sm:$0xff] %vm788, %v730
        %794 = vst.msk [vmem:[%s322 + $0x28] sm:$0xff] %vm788, %v735
        %795 = vst.msk [vmem:[%s322 + $0x30] sm:$0xff] %vm788, %v740
        %796 = vst.msk [vmem:[%s322 + $0x38] sm:$0xff] %vm788, %v745
        %797 = vst.msk [vmem:[%s322 + $0x40] sm:$0xff] %vm788, %v750
        %798 = vst.msk [vmem:[%s322 + $0x48] sm:$0xff] %vm788, %v755
        %799 = vst.msk [vmem:[%s322 + $0x50] sm:$0xff] %vm788, %v760
        %800 = vst.msk [vmem:[%s322 + $0x58] sm:$0xff] %vm788, %v765
        %801 = vst.msk [vmem:[%s322 + $0x60] sm:$0xff] %vm788, %v770
        %802 = vst.msk [vmem:[%s322 + $0x68] sm:$0xff] %vm788, %v775
        %803 = vst.msk [vmem:[%s322 + $0x70] sm:$0xff] %vm788, %v780
        %804 = vst.msk [vmem:[%s322 + $0x78] sm:$0xff] %vm788, %v785
        %s805 = sand.u32 %s146, 1
        %s806 = scalar_lea.sflag [#allocation4], %s805
        %s807 = sand.u32 %s146, 1
        %s808 = smul.addr %s807, 64
        %s809 = scalar_lea.vmem [#allocation5], %s808
        %s810 = sand.u32 %s172, 1
        %s811 = scalar_lea.sflag [#allocation7], %s810
        %s812 = sand.u32 %s172, 1
        %s813 = smul.addr %s812, 128
        %s814 = scalar_lea.vmem [#allocation6], %s813
        %s815 = smul.u32 16, %s28
        %p816 = scmp.lt.s32.totalorder %s815, 31
        %s817 = scalar_select %p816, %s815, 31
        %s818 = smul.addr %s817, 8
        %s819 = scalar_lea.vmem %s7, %s818
        // Predicated region
        $region45: #{tpu_custom_call.1} parent=39 // pred_check
          %p820 = pneg %p156
        $region46: #{tpu_custom_call.1} parent=39 // pred_check_branch
          %822 = sbr.rel (%p820) target = $region48
        $region47: #{tpu_custom_call.1} parent=39 // pred_region
          %s823 = smul.u32 16, %s28
          %s825 = ssub.s32 1024, 1024
          %826 = vsyncadd %s806, %s825
          %s827 = smul.addr %s823, 64
          %s828 = scalar_lea.hbm %s5, %s827
          %s829 = sshll.u32 %s809, 4
          %s830 = int_to_ptr.vmem [resolvable:$true] %s829
          %835 = dma.vmem_to_hbm [thread:$0]  %s830, 1024, %s828, %s806, 64, 64, 4
        $region48: #{tpu_custom_call.1} parent=39 // pred_fallthru
          _
        // Predicated region
        $region49: #{tpu_custom_call.1} parent=39 // pred_check
          %p836 = pneg %p182
        $region50: #{tpu_custom_call.1} parent=39 // pred_check_branch
          %838 = sbr.rel (%p836) target = $region52
        $region51: #{tpu_custom_call.1} parent=39 // pred_region
          %s839 = smul.u32 16, %s28
          %s841 = ssub.s32 2048, 2048
          %842 = vsyncadd %s811, %s841
          %s843 = smul.addr %s839, 128
          %s844 = scalar_lea.hbm %s6, %s843
          %s845 = sshll.u32 %s814, 4
          %s846 = int_to_ptr.vmem [resolvable:$true] %s845
          %851 = dma.vmem_to_hbm [thread:$0]  %s846, 2048, %s844, %s811, 128, 128, 8
        $region52: #{tpu_custom_call.1} parent=39 // pred_fallthru
          _
        // Predicated region
        $region53: #{tpu_custom_call.1} parent=39 // pred_check
          %p852 = pneg %p208
        $region54: #{tpu_custom_call.1} parent=39 // pred_check_branch
          %854 = sbr.rel (%p852) target = $region56
        $region55: #{tpu_custom_call.1} parent=39 // pred_region
          %s855 = smul.u32 16, %s28
        $region56: #{tpu_custom_call.1} parent=39 // pred_fallthru
          _
      $region40: #{tpu_custom_call.1} parent=5 // pred_fallthru
        _
      %p856 = scmp.le.s32.totalorder 2, %s23
      // Predicated region
      $region57: #{tpu_custom_call.1} parent=5 // pred_check
        %p857 = pneg %p856
      $region58: #{tpu_custom_call.1} parent=5 // pred_check_branch
        %859 = sbr.rel (%p857) target = $region60
      $region59: #{tpu_custom_call.1} parent=5 // pred_region
        %s860 = ssub.s32 %s23, 2
        // Predicated region
        $region61: #{tpu_custom_call.1} parent=59 // pred_check
          %p861 = pneg %p162
        $region62: #{tpu_custom_call.1} parent=59 // pred_check_branch
          %863 = sbr.rel (%p861) target = $region64
        $region63: #{tpu_custom_call.1} parent=59 // pred_region
          %s864 = sand.u32 %s147, 1
          %s865 = scalar_lea.sflag [#allocation4], %s864
          %s866 = sand.u32 %s147, 1
          %s867 = smul.addr %s866, 64
          %s868 = scalar_lea.vmem [#allocation5], %s867
          %869 = dma.done %s865, 1024
        $region64: #{tpu_custom_call.1} parent=59 // pred_fallthru
          _
        // Predicated region
        $region65: #{tpu_custom_call.1} parent=59 // pred_check
          %p870 = pneg %p188
        $region66: #{tpu_custom_call.1} parent=59 // pred_check_branch
          %872 = sbr.rel (%p870) target = $region68
        $region67: #{tpu_custom_call.1} parent=59 // pred_region
          %s873 = sand.u32 %s173, 1
          %s874 = scalar_lea.sflag [#allocation7], %s873
          %s875 = sand.u32 %s173, 1
          %s876 = smul.addr %s875, 128
          %s877 = scalar_lea.vmem [#allocation6], %s876
          %878 = dma.done %s874, 2048
        $region68: #{tpu_custom_call.1} parent=59 // pred_fallthru
          _
        // Predicated region
        $region69: #{tpu_custom_call.1} parent=59 // pred_check
          %p879 = pneg %p214
        $region70: #{tpu_custom_call.1} parent=59 // pred_check_branch
          %881 = sbr.rel (%p879) target = $region72
        $region71: #{tpu_custom_call.1} parent=59 // pred_region
          %s882 = smul.u32 16, %s29
          %p883 = scmp.lt.s32.totalorder %s882, 31
          %s884 = scalar_select %p883, %s882, 31
          %s885 = smul.addr %s884, 8
          %s886 = scalar_lea.vmem %s7, %s885
        $region72: #{tpu_custom_call.1} parent=59 // pred_fallthru
          _
      $region60: #{tpu_custom_call.1} parent=5 // pred_fallthru
        _
    $region6: #{tpu_custom_call.1} parent=1 // loop_footer
      %s27 = sadd.s32 1, %s23
    $region7: #{tpu_custom_call.1} parent=1 // loop_footer_branch
      %22 = sbr.rel target = $region3
    $region8: #{tpu_custom_call.1} parent=1 // loop_exit
      _
    %887 = vsyncpa [#allocation3], 1
    %s888 = scalar_lea.sflag [#allocation3], 1
    %889 = vsyncpa %s888, 1
    %890 = vsyncpa [#allocation4], 1
    %s891 = scalar_lea.sflag [#allocation4], 1
    %892 = vsyncpa %s891, 1
    %893 = vsyncpa [#allocation7], 1
    %s894 = scalar_lea.sflag [#allocation7], 1
    %895 = vsyncpa %s894, 1

</llo_original>
